<compile_context>
chip_gen: v6e
topology: v6e:2x2x1
jax: 0.10.0
libtpu: 0.0.40
codegen_flags: <defaults>
</compile_context>

<pallas_src>
import functools

import jax
import jax.numpy as jnp
from jax.experimental import pallas as pl
from jax.experimental.pallas import tpu as pltpu

BN_EPS = 1e-5


def _linear1_relu(x_ref, w1_ref, bgb_ref):
    """h = relu(x @ W1 + b1) for the current batch tile."""
    h = jnp.dot(x_ref[...], w1_ref[...], preferred_element_type=jnp.float32)
    return jnp.maximum(h + bgb_ref[0:1, :], 0.0)


def dqn_single_phase_kernel(x_ref, w1_ref, bgb_ref, w2_ref, b2_ref, o_ref, *,
                            batch_size):
    """Whole batch in one tile: GEMM1 -> exact BN -> GEMM2 in a single step."""
    h = _linear1_relu(x_ref, w1_ref, bgb_ref)
    inv_b = 1.0 / batch_size
    mean = jnp.sum(h, axis=0, keepdims=True) * inv_b
    centered = h - mean
    var = jnp.sum(centered * centered, axis=0, keepdims=True) * inv_b  # exact (biased)
    scale = jax.lax.rsqrt(var + BN_EPS) * bgb_ref[1:2, :]              # gamma folded
    shift = bgb_ref[2:3, :] - mean * scale                             # beta - mean*scale
    hn = h * scale + shift
    out = jnp.dot(hn, w2_ref[...], preferred_element_type=jnp.float32)
    o_ref[...] = jnp.maximum(out + b2_ref[...], 0.0).astype(o_ref.dtype)


def dqn_two_phase_kernel(x_ref, w1_ref, bgb_ref, w2_ref, b2_ref, o_ref,
                         stats_ref, affine_ref, *hcache, batch_size, tile_b):
    """Grid = (phase, batch_tile).

    phase 0: h = relu(x @ W1 + b1); accumulate sum(h), sum(h*h); cache h in VMEM.
    phase 1: finalize BN scale/shift once (i == 0), then
             o = relu((h * scale + shift) @ W2 + b2) per tile, reusing cached h.
    """
    cache_h = len(hcache) == 1
    phase = pl.program_id(0)
    i = pl.program_id(1)

    @pl.when(phase == 0)
    def _accumulate():
        h = _linear1_relu(x_ref, w1_ref, bgb_ref)
        if cache_h:
            start = pl.multiple_of(i * tile_b, tile_b)
            hcache[0][pl.ds(start, tile_b), :] = h

        @pl.when(i == 0)
        def _init():
            stats_ref[...] = jnp.zeros_like(stats_ref)

        # NOTE: E[x^2]-E[x]^2 in f32; the max(...,0) guard handles small negative
        # cancellation. (Exact two-pass variance would need a third phase.)
        stats_ref[0:1, :] += jnp.sum(h, axis=0, keepdims=True)
        stats_ref[1:2, :] += jnp.sum(h * h, axis=0, keepdims=True)

    @pl.when(phase == 1)
    def _normalize_and_project():
        @pl.when(i == 0)
        def _finalize_stats():
            inv_b = 1.0 / batch_size
            mean = stats_ref[0:1, :] * inv_b
            var = jnp.maximum(stats_ref[1:2, :] * inv_b - mean * mean, 0.0)
            scale = jax.lax.rsqrt(var + BN_EPS) * bgb_ref[1:2, :]
            affine_ref[0:1, :] = scale
            affine_ref[1:2, :] = bgb_ref[2:3, :] - mean * scale

        if cache_h:
            start = pl.multiple_of(i * tile_b, tile_b)
            h = hcache[0][pl.ds(start, tile_b), :]
        else:
            h = _linear1_relu(x_ref, w1_ref, bgb_ref)

        hn = h * affine_ref[0:1, :] + affine_ref[1:2, :]
        out = jnp.dot(hn, w2_ref[...], preferred_element_type=jnp.float32)
        o_ref[...] = jnp.maximum(out + b2_ref[...], 0.0).astype(o_ref.dtype)


def _pick_tile(batch, block_b):
    """Largest usable batch tile that divides B exactly (keeps BN stats exact)."""
    if batch <= block_b:
        return batch
    if batch % block_b == 0:
        return block_b
    for t in range(block_b, 7, -1):
        if batch % t == 0 and t % 8 == 0:
            return t
    # TODO(synk): pad B to a multiple of block_b and correct the BN divisor
    # instead of one giant tile for awkward batch sizes.
    return batch


def dqn_forward(x, w1, b1, gamma, beta, w2, b2, *, block_b=512,
                h_cache_budget_bytes=24 * 1024 * 1024):
    B, d_in = x.shape
    H = w1.shape[1]
    d_out = w2.shape[1]

    # Pack b1 / gamma / beta into one (3, H) operand: one DMA, one VMEM tile.
    bgb = jnp.concatenate(
        [b1.reshape(1, H), gamma.reshape(1, H), beta.reshape(1, H)], axis=0)
    b2 = b2.reshape(1, d_out)

    tb = _pick_tile(B, block_b)
    nb = B // tb

    if nb == 1:
        # ---- Single-phase fast path: whole batch fits one tile. ----
        kernel = functools.partial(dqn_single_phase_kernel, batch_size=B)
        return pl.pallas_call(
            kernel,
            out_shape=jax.ShapeDtypeStruct((B, d_out), jnp.float32),
            grid_spec=pltpu.PrefetchScalarGridSpec(
                num_scalar_prefetch=0,
                grid=(1,),
                in_specs=[
                    pl.BlockSpec((B, d_in), lambda i: (0, 0)),
                    pl.BlockSpec((d_in, H), lambda i: (0, 0)),
                    pl.BlockSpec((3, H), lambda i: (0, 0)),
                    pl.BlockSpec((H, d_out), lambda i: (0, 0)),
                    pl.BlockSpec((1, d_out), lambda i: (0, 0)),
                ],
                out_specs=pl.BlockSpec((B, d_out), lambda i: (0, 0)),
            ),
            compiler_params=pltpu.CompilerParams(
                dimension_semantics=("arbitrary",),
                vmem_limit_bytes=48 * 1024 * 1024,
            ),
        )(x, w1, bgb, w2, b2)

    # ---- Two-phase path: phase 0 = stats (+ h cache), phase 1 = normalize+GEMM2.
    cache_h = (B * H * 4) <= h_cache_budget_bytes

    kernel = functools.partial(dqn_two_phase_kernel, batch_size=B, tile_b=tb)

    scratch = [
        pltpu.VMEM((2, H), jnp.float32),   # [sum(h); sum(h*h)]
        pltpu.VMEM((2, H), jnp.float32),   # [scale; shift]
    ]
    if cache_h:
        scratch.append(pltpu.VMEM((B, H), jnp.float32))   # full-batch h cache

    if cache_h:
        # Phase 1 never reads x: pin its block index to the last phase-0 block so
        # no extra x DMA is issued at all in phase 1.
        x_map = lambda p, i: ((1 - p) * i + p * (nb - 1), 0)
    else:
        x_map = lambda p, i: (i, 0)

    est_bytes = (
        2 * tb * d_in + 2 * d_in * H + 2 * 3 * H + 2 * H * d_out + 2 * d_out
        + 2 * tb * d_out + 4 * H + (B * H if cache_h else 0)
    ) * 4
    vmem_limit = min(48 * 1024 * 1024, max(32 * 1024 * 1024, 2 * est_bytes))

    return pl.pallas_call(
        kernel,
        out_shape=jax.ShapeDtypeStruct((B, d_out), jnp.float32),
        grid_spec=pltpu.PrefetchScalarGridSpec(
            num_scalar_prefetch=0,
            grid=(2, nb),                                   # (phase, batch tile)
            in_specs=[
                pl.BlockSpec((tb, d_in), x_map),                # x tile
                pl.BlockSpec((d_in, H), lambda p, i: (0, 0)),   # W1 (resident)
                pl.BlockSpec((3, H), lambda p, i: (0, 0)),      # [b1; gamma; beta]
                pl.BlockSpec((H, d_out), lambda p, i: (0, 0)),  # W2 (resident)
                pl.BlockSpec((1, d_out), lambda p, i: (0, 0)),  # b2
            ],
            # p*i keeps all phase-0 steps on output block 0 (never written, never
            # flushed because the index doesn't change); phase 1 visits each block
            # exactly once. Invariant: grid order is row-major (phase outer).
            out_specs=pl.BlockSpec((tb, d_out), lambda p, i: (p * i, 0)),
            scratch_shapes=scratch,
        ),
        compiler_params=pltpu.CompilerParams(
            # Phase must run before batch tiles; batch tiles carry BN scratch.
            dimension_semantics=("arbitrary", "arbitrary"),
            vmem_limit_bytes=vmem_limit,
        ),
    )(x, w1, bgb, w2, b2)


def init_params(key, input_dims, hidden_dims, output_dims):
    """Kaiming-normal weights (fan_in, gain=sqrt(2)), zero biases, BN gamma=1 /
    beta=0 — matching the PyTorch __init__. Weights stored (in, out)."""
    k1, k2 = jax.random.split(key)
    std1 = (2.0 / input_dims) ** 0.5
    std2 = (2.0 / hidden_dims) ** 0.5
    w1 = jax.random.normal(k1, (input_dims, hidden_dims), jnp.float32) * std1
    w2 = jax.random.normal(k2, (hidden_dims, output_dims), jnp.float32) * std2
    b1 = jnp.zeros((1, hidden_dims), jnp.float32)
    b2 = jnp.zeros((1, output_dims), jnp.float32)
    gamma = jnp.ones((1, hidden_dims), jnp.float32)
    beta = jnp.zeros((1, hidden_dims), jnp.float32)
    return w1, b1, gamma, beta, w2, b2


def dqn_reference(x, w1, b1, gamma, beta, w2, b2):
    h = jnp.maximum(x @ w1 + b1, 0.0)
    mean = h.mean(0, keepdims=True)
    var = ((h - mean) ** 2).mean(0, keepdims=True)
    hn = (h - mean) / jnp.sqrt(var + BN_EPS) * gamma + beta
    return jnp.maximum(hn @ w2 + b2, 0.0)


if __name__ == "__main__":
    key = jax.random.PRNGKey(0)
    kx, kx2, kp = jax.random.split(key, 3)

    input_dims, hidden_dims, output_dims = 32, 128, 16
    params = init_params(kp, input_dims, hidden_dims, output_dims)

    batch = 256
    x = jax.random.normal(kx, (batch, input_dims), jnp.float32)
    ref = dqn_reference(x, *params)

    # Path 1: single-phase fast path (default block_b=512 >= B).
    out = dqn_forward(x, *params)
    jax.block_until_ready(out)
    assert out.shape == (batch, output_dims)
    assert jnp.allclose(out, ref, atol=2e-4, rtol=2e-4)

    # Path 2: two-phase with h cached in VMEM between phases.
    out2 = dqn_forward(x, *params, block_b=128)
    jax.block_until_ready(out2)
    assert jnp.allclose(out2, ref, atol=2e-4, rtol=2e-4)

    # Path 3: two-phase recompute fallback (cache budget forced to 0).
    out3 = dqn_forward(x, *params, block_b=128, h_cache_budget_bytes=0)
    jax.block_until_ready(out3)
    assert jnp.allclose(out3, ref, atol=2e-4, rtol=2e-4)

    # Small-batch path: single tile, single phase.
    batch_small = 8
    xs = jax.random.normal(kx2, (batch_small, input_dims), jnp.float32)
    out_s = dqn_forward(xs, *params)
    jax.block_until_ready(out_s)
    ref_s = dqn_reference(xs, *params)
    assert out_s.shape == (batch_small, output_dims)
    assert jnp.allclose(out_s, ref_s, atol=2e-4, rtol=2e-4)

    print("KERNEL_OK")
</pallas_src>

<mosaic_0001>
module attributes {stable_mosaic.version = 11 : i64} {
  func.func @dqn_single_phase_kernel(%arg0: i32, %arg1: memref<256x32xf32, #tpu.memory_space<vmem>>, %arg2: memref<32x128xf32, #tpu.memory_space<vmem>>, %arg3: memref<3x128xf32, #tpu.memory_space<vmem>>, %arg4: memref<128x16xf32, #tpu.memory_space<vmem>>, %arg5: memref<1x16xf32, #tpu.memory_space<vmem>>, %arg6: memref<256x16xf32, #tpu.memory_space<vmem>>) attributes {dimension_semantics = [#tpu.dimension_semantics<arbitrary>], iteration_bounds = array<i64: 1>, scalar_prefetch = 0 : i64, scratch_operands = 0 : i64, tpu.core_type = #tpu.core_type<tc>, window_params = [{pipeline_mode = #tpu.pipeline_mode<synchronous>, transform_indices = @transform_0, window_bounds = array<i64: 256, 32>}, {pipeline_mode = #tpu.pipeline_mode<synchronous>, transform_indices = @transform_1, window_bounds = array<i64: 32, 128>}, {pipeline_mode = #tpu.pipeline_mode<synchronous>, transform_indices = @transform_2, window_bounds = array<i64: 3, 128>}, {pipeline_mode = #tpu.pipeline_mode<synchronous>, transform_indices = @transform_3, window_bounds = array<i64: 128, 16>}, {pipeline_mode = #tpu.pipeline_mode<synchronous>, transform_indices = @transform_4, window_bounds = array<i64: 1, 16>}, {pipeline_mode = #tpu.pipeline_mode<synchronous>, transform_indices = @transform_5, window_bounds = array<i64: 256, 16>}]} {
    %c0 = arith.constant 0 : index
    %c0_0 = arith.constant 0 : index
    %0 = vector.load %arg1[%c0, %c0_0] : memref<256x32xf32, #tpu.memory_space<vmem>>, vector<256x32xf32>
    %c0_1 = arith.constant 0 : index
    %c0_2 = arith.constant 0 : index
    %1 = vector.load %arg2[%c0_1, %c0_2] : memref<32x128xf32, #tpu.memory_space<vmem>>, vector<32x128xf32>
    %cst = arith.constant dense<0.000000e+00> : vector<256x128xf32>
    %2 = tpu.matmul %0, %1, %cst {dimension_numbers = #tpu.dot_dimension_numbers<[1], [0], [0], [1], [0, 0, 1, 1], [], []>} : vector<256x32xf32>, vector<32x128xf32>, vector<256x128xf32> -> vector<256x128xf32>
    %c0_3 = arith.constant 0 : index
    %c0_4 = arith.constant 0 : index
    %3 = vector.load %arg3[%c0_3, %c0_4] : memref<3x128xf32, #tpu.memory_space<vmem>>, vector<1x128xf32>
    %4 = vector.broadcast %3 : vector<1x128xf32> to vector<256x128xf32>
    %5 = arith.addf %2, %4 : vector<256x128xf32>
    %cst_5 = arith.constant 0.000000e+00 : f32
    %6 = vector.broadcast %cst_5 : f32 to vector<256x128xf32>
    %7 = arith.maximumf %5, %6 : vector<256x128xf32>
    %cst_6 = arith.constant dense<0.000000e+00> : vector<128xf32>
    %8 = vector.multi_reduction <add>, %7, %cst_6 [0] : vector<256x128xf32> to vector<128xf32>
    %9 = vector.shape_cast %8 : vector<128xf32> to vector<1x128xf32>
    %cst_7 = arith.constant 3.906250e-03 : f32
    %10 = vector.broadcast %cst_7 : f32 to vector<1x128xf32>
    %11 = arith.mulf %9, %10 : vector<1x128xf32>
    %12 = vector.broadcast %11 : vector<1x128xf32> to vector<256x128xf32>
    %13 = arith.subf %7, %12 : vector<256x128xf32>
    %14 = arith.mulf %13, %13 : vector<256x128xf32>
    %cst_8 = arith.constant dense<0.000000e+00> : vector<128xf32>
    %15 = vector.multi_reduction <add>, %14, %cst_8 [0] : vector<256x128xf32> to vector<128xf32>
    %16 = vector.shape_cast %15 : vector<128xf32> to vector<1x128xf32>
    %cst_9 = arith.constant 3.906250e-03 : f32
    %17 = vector.broadcast %cst_9 : f32 to vector<1x128xf32>
    %18 = arith.mulf %16, %17 : vector<1x128xf32>
    %cst_10 = arith.constant 9.99999974E-6 : f32
    %19 = vector.broadcast %cst_10 : f32 to vector<1x128xf32>
    %20 = arith.addf %18, %19 : vector<1x128xf32>
    %21 = math.rsqrt %20 : vector<1x128xf32>
    %c1 = arith.constant 1 : index
    %c0_11 = arith.constant 0 : index
    %22 = vector.load %arg3[%c1, %c0_11] : memref<3x128xf32, #tpu.memory_space<vmem>>, vector<1x128xf32>
    %23 = arith.mulf %21, %22 : vector<1x128xf32>
    %c2 = arith.constant 2 : index
    %c0_12 = arith.constant 0 : index
    %24 = vector.load %arg3[%c2, %c0_12] : memref<3x128xf32, #tpu.memory_space<vmem>>, vector<1x128xf32>
    %25 = arith.mulf %11, %23 : vector<1x128xf32>
    %26 = arith.subf %24, %25 : vector<1x128xf32>
    %27 = vector.broadcast %23 : vector<1x128xf32> to vector<256x128xf32>
    %28 = arith.mulf %7, %27 : vector<256x128xf32>
    %29 = vector.broadcast %26 : vector<1x128xf32> to vector<256x128xf32>
    %30 = arith.addf %28, %29 : vector<256x128xf32>
    %c0_13 = arith.constant 0 : index
    %c0_14 = arith.constant 0 : index
    %31 = vector.load %arg4[%c0_13, %c0_14] : memref<128x16xf32, #tpu.memory_space<vmem>>, vector<128x16xf32>
    %cst_15 = arith.constant dense<0.000000e+00> : vector<256x16xf32>
    %32 = tpu.matmul %30, %31, %cst_15 {dimension_numbers = #tpu.dot_dimension_numbers<[1], [0], [0], [1], [0, 0, 1, 1], [], []>} : vector<256x128xf32>, vector<128x16xf32>, vector<256x16xf32> -> vector<256x16xf32>
    %c0_16 = arith.constant 0 : index
    %c0_17 = arith.constant 0 : index
    %33 = vector.load %arg5[%c0_16, %c0_17] : memref<1x16xf32, #tpu.memory_space<vmem>>, vector<1x16xf32>
    %34 = vector.broadcast %33 : vector<1x16xf32> to vector<256x16xf32>
    %35 = arith.addf %32, %34 : vector<256x16xf32>
    %cst_18 = arith.constant 0.000000e+00 : f32
    %36 = vector.broadcast %cst_18 : f32 to vector<256x16xf32>
    %37 = arith.maximumf %35, %36 : vector<256x16xf32>
    %c0_19 = arith.constant 0 : index
    %c0_20 = arith.constant 0 : index
    %38 = vector.load %arg6[%c0_19, %c0_20] : memref<256x16xf32, #tpu.memory_space<vmem>>, vector<256x16xf32>
    tpu.vector_store %arg6[%c0_19, %c0_20], %37 {strides = array<i32>} : memref<256x16xf32, #tpu.memory_space<vmem>>, vector<256x16xf32>,
    return
  }
  func.func @transform_0(%arg0: i32) -> (i32, i32) {
    %c0_i32 = arith.constant 0 : i32
    %c0_i32_0 = arith.constant 0 : i32
    %c0_i32_1 = arith.constant 0 : i32
    return %c0_i32, %c0_i32_0 : i32, i32
  }
  func.func @transform_1(%arg0: i32) -> (i32, i32) {
    %c0_i32 = arith.constant 0 : i32
    %c0_i32_0 = arith.constant 0 : i32
    %c0_i32_1 = arith.constant 0 : i32
    return %c0_i32, %c0_i32_0 : i32, i32
  }
  func.func @transform_2(%arg0: i32) -> (i32, i32) {
    %c0_i32 = arith.constant 0 : i32
    %c0_i32_0 = arith.constant 0 : i32
    %c0_i32_1 = arith.constant 0 : i32
    return %c0_i32, %c0_i32_0 : i32, i32
  }
  func.func @transform_3(%arg0: i32) -> (i32, i32) {
    %c0_i32 = arith.constant 0 : i32
    %c0_i32_0 = arith.constant 0 : i32
    %c0_i32_1 = arith.constant 0 : i32
    return %c0_i32, %c0_i32_0 : i32, i32
  }
  func.func @transform_4(%arg0: i32) -> (i32, i32) {
    %c0_i32 = arith.constant 0 : i32
    %c0_i32_0 = arith.constant 0 : i32
    %c0_i32_1 = arith.constant 0 : i32
    return %c0_i32, %c0_i32_0 : i32, i32
  }
  func.func @transform_5(%arg0: i32) -> (i32, i32) {
    %c0_i32 = arith.constant 0 : i32
    %c0_i32_0 = arith.constant 0 : i32
    %c0_i32_1 = arith.constant 0 : i32
    return %c0_i32, %c0_i32_0 : i32, i32
  }
}

</mosaic_0001>

<llo_original>
// kernel: tpu_custom_call.1
$region0: #{tpu_custom_call.1}
  #allocation0 [shape = 'u32[]', space=smem, size = 0x4, offset = 0x4, fixed_abs, tag = 'smem constant byte address 0x4 - core index']
  #allocation1 [shape = 'u32[144,128]{1,0:T(1,128)}', space=vmem, size = 0x12000, scoped, tag = 'internal scratch']
  %s0 = inlined_call_operand.vmem [shape: f32[256,32], index: 0, kind: input, shape index: {}]
  %s1 = inlined_call_operand.vmem [shape: f32[32,128], index: 1, kind: input, shape index: {}]
  %s2 = inlined_call_operand.vmem [shape: f32[3,128], index: 2, kind: input, shape index: {}]
  %s3 = inlined_call_operand.vmem [shape: f32[128,16], index: 3, kind: input, shape index: {}]
  %s4 = inlined_call_operand.vmem [shape: f32[1,16], index: 4, kind: input, shape index: {}]
  %s5 = inlined_call_operand.vmem [shape: f32[256,16], index: 5, kind: output, shape index: {}]
  %s6 = sld [smem:[#allocation0]]
  $region30: #{tpu_custom_call.1} parent=0
    _
  %s8 = ssub.s32 1, %s6
  %s9 = scalar_select 0, %s8, %s6
  // Predicated region
  $region2: #{tpu_custom_call.1} parent=0 // pred_check
    _
  $region3: #{tpu_custom_call.1} parent=0 // pred_check_branch
    %11 = sbr.rel (0) target = $region5
  $region4: #{tpu_custom_call.1} parent=0 // pred_region
    _
  $region5: #{tpu_custom_call.1} parent=0 // pred_fallthru
    _
  // Predicated region
  $region6: #{tpu_custom_call.1} parent=0 // pred_check
    _
  $region7: #{tpu_custom_call.1} parent=0 // pred_check_branch
    %13 = sbr.rel (0) target = $region9
  $region8: #{tpu_custom_call.1} parent=0 // pred_region
    _
  $region9: #{tpu_custom_call.1} parent=0 // pred_fallthru
    _
  // Predicated region
  $region10: #{tpu_custom_call.1} parent=0 // pred_check
    _
  $region11: #{tpu_custom_call.1} parent=0 // pred_check_branch
    %15 = sbr.rel (0) target = $region13
  $region12: #{tpu_custom_call.1} parent=0 // pred_region
    _
  $region13: #{tpu_custom_call.1} parent=0 // pred_fallthru
    _
  // Predicated region
  $region14: #{tpu_custom_call.1} parent=0 // pred_check
    _
  $region15: #{tpu_custom_call.1} parent=0 // pred_check_branch
    %17 = sbr.rel (0) target = $region17
  $region16: #{tpu_custom_call.1} parent=0 // pred_region
    _
  $region17: #{tpu_custom_call.1} parent=0 // pred_fallthru
    _
  // Predicated region
  $region18: #{tpu_custom_call.1} parent=0 // pred_check
    _
  $region19: #{tpu_custom_call.1} parent=0 // pred_check_branch
    %19 = sbr.rel (0) target = $region21
  $region20: #{tpu_custom_call.1} parent=0 // pred_region
    _
  $region21: #{tpu_custom_call.1} parent=0 // pred_fallthru
    _
  %v20 = vld [vmem:[%s0] sm:$0xff]
  %v21 = vld [vmem:[%s0 + $0x8] sm:$0xff]
  %v22 = vld [vmem:[%s0 + $0x10] sm:$0xff]
  %v23 = vld [vmem:[%s0 + $0x18] sm:$0xff]
  %v24 = vld [vmem:[%s0 + $0x20] sm:$0xff]
  %v25 = vld [vmem:[%s0 + $0x28] sm:$0xff]
  %v26 = vld [vmem:[%s0 + $0x30] sm:$0xff]
  %v27 = vld [vmem:[%s0 + $0x38] sm:$0xff]
  %v28 = vld [vmem:[%s0 + $0x40] sm:$0xff]
  %v29 = vld [vmem:[%s0 + $0x48] sm:$0xff]
  %v30 = vld [vmem:[%s0 + $0x50] sm:$0xff]
  %v31 = vld [vmem:[%s0 + $0x58] sm:$0xff]
  %v32 = vld [vmem:[%s0 + $0x60] sm:$0xff]
  %v33 = vld [vmem:[%s0 + $0x68] sm:$0xff]
  %v34 = vld [vmem:[%s0 + $0x70] sm:$0xff]
  %v35 = vld [vmem:[%s0 + $0x78] sm:$0xff]
  %v36 = vld [vmem:[%s0 + $0x80] sm:$0xff]
  %v37 = vld [vmem:[%s0 + $0x88] sm:$0xff]
  %v38 = vld [vmem:[%s0 + $0x90] sm:$0xff]
  %v39 = vld [vmem:[%s0 + $0x98] sm:$0xff]
  %v40 = vld [vmem:[%s0 + $0xa0] sm:$0xff]
  %v41 = vld [vmem:[%s0 + $0xa8] sm:$0xff]
  %v42 = vld [vmem:[%s0 + $0xb0] sm:$0xff]
  %v43 = vld [vmem:[%s0 + $0xb8] sm:$0xff]
  %v44 = vld [vmem:[%s0 + $0xc0] sm:$0xff]
  %v45 = vld [vmem:[%s0 + $0xc8] sm:$0xff]
  %v46 = vld [vmem:[%s0 + $0xd0] sm:$0xff]
  %v47 = vld [vmem:[%s0 + $0xd8] sm:$0xff]
  %v48 = vld [vmem:[%s0 + $0xe0] sm:$0xff]
  %v49 = vld [vmem:[%s0 + $0xe8] sm:$0xff]
  %v50 = vld [vmem:[%s0 + $0xf0] sm:$0xff]
  %v51 = vld [vmem:[%s0 + $0xf8] sm:$0xff]
  %v52 = vld [vmem:[%s1] sm:$0xff]
  %v53 = vld [vmem:[%s1 + $0x8] sm:$0xff]
  %v54 = vld [vmem:[%s1 + $0x10] sm:$0xff]
  %v55 = vld [vmem:[%s1 + $0x18] sm:$0xff]
  %v56 = vld [vmem:[%s2] sm:$0x1]
  %v57 = vlaneseq
  %v58 = vshrl.u32 %v57, 7
  %v59 = vsub.s32 0, %v58
  %v60 = vrot.slane %v56, %v59
  %vm61 = vcmask 261120
  %v63 = vsel %vm61, %v20, 0
  %v66 = vsel %vm61, %v21, 0
  %v69 = vsel %vm61, %v22, 0
  %v72 = vsel %vm61, %v23, 0
  %v75 = vsel %vm61, %v24, 0
  %v78 = vsel %vm61, %v25, 0
  %v81 = vsel %vm61, %v26, 0
  %v84 = vsel %vm61, %v27, 0
  %v87 = vsel %vm61, %v28, 0
  %v90 = vsel %vm61, %v29, 0
  %v93 = vsel %vm61, %v30, 0
  %v96 = vsel %vm61, %v31, 0
  %v99 = vsel %vm61, %v32, 0
  %v102 = vsel %vm61, %v33, 0
  %v105 = vsel %vm61, %v34, 0
  %v108 = vsel %vm61, %v35, 0
  %v111 = vsel %vm61, %v36, 0
  %v114 = vsel %vm61, %v37, 0
  %v117 = vsel %vm61, %v38, 0
  %v120 = vsel %vm61, %v39, 0
  %v123 = vsel %vm61, %v40, 0
  %v126 = vsel %vm61, %v41, 0
  %v129 = vsel %vm61, %v42, 0
  %v132 = vsel %vm61, %v43, 0
  %v135 = vsel %vm61, %v44, 0
  %v138 = vsel %vm61, %v45, 0
  %v141 = vsel %vm61, %v46, 0
  %v144 = vsel %vm61, %v47, 0
  %v147 = vsel %vm61, %v48, 0
  %v150 = vsel %vm61, %v49, 0
  %v153 = vsel %vm61, %v50, 0
  %v156 = vsel %vm61, %v51, 0
  %158 = vmatprep.subr.mxu0 0.0
  %159 = vmatpush1.msra.mxu0 0.0
  %160 = vmatprep.subr.mxu0 0.0
  %161 = vmatpush1.msra.mxu0 0.0
  %162 = vmatprep.subr.mxu0 0.0
  %163 = vmatpush1.msra.mxu0 0.0
  %164 = vmatprep.subr.mxu0 0.0
  %165 = vmatpush1.msra.mxu0 0.0
  %166 = vmatprep.subr.mxu0 0.0
  %167 = vmatpush1.msra.mxu0 0.0
  %168 = vmatprep.subr.mxu0 0.0
  %169 = vmatpush1.msra.mxu0 0.0
  %170 = vmatprep.subr.mxu0 0.0
  %171 = vmatpush1.msra.mxu0 0.0
  %172 = vmatprep.subr.mxu0 0.0
  %173 = vmatpush1.msra.mxu0 0.0
  %174 = vmatprep.subr.mxu0 0.0
  %175 = vmatpush1.msra.mxu0 0.0
  %176 = vmatprep.subr.mxu0 0.0
  %177 = vmatpush1.msra.mxu0 0.0
  %178 = vmatprep.subr.mxu0 0.0
  %179 = vmatpush1.msra.mxu0 0.0
  %180 = vmatprep.subr.mxu0 0.0
  %181 = vmatpush1.msra.mxu0 0.0
  %182 = vmatprep.subr.mxu0 0.0
  %183 = vmatpush1.msra.mxu0 %v55
  %184 = vmatprep.subr.mxu0 0.0
  %185 = vmatpush1.msra.mxu0 %v54
  %186 = vmatprep.subr.mxu0 0.0
  %187 = vmatpush1.msra.mxu0 %v53
  %188 = vmatprep.subr.mxu0 0.0
  %189 = vmatpush1.msra.mxu0 %v52
  %190 = vmatprep.subr.mxu0 0.0
  %191 = vmatpush2.msra.mxu0 0.0
  %192 = vmatprep.subr.mxu0 0.0
  %193 = vmatpush2.msra.mxu0 0.0
  %194 = vmatprep.subr.mxu0 0.0
  %195 = vmatpush2.msra.mxu0 0.0
  %196 = vmatprep.subr.mxu0 0.0
  %197 = vmatpush2.msra.mxu0 0.0
  %198 = vmatprep.subr.mxu0 0.0
  %199 = vmatpush2.msra.mxu0 0.0
  %200 = vmatprep.subr.mxu0 0.0
  %201 = vmatpush2.msra.mxu0 0.0
  %202 = vmatprep.subr.mxu0 0.0
  %203 = vmatpush2.msra.mxu0 0.0
  %204 = vmatprep.subr.mxu0 0.0
  %205 = vmatpush2.msra.mxu0 0.0
  %206 = vmatprep.subr.mxu0 0.0
  %207 = vmatpush2.msra.mxu0 0.0
  %208 = vmatprep.subr.mxu0 0.0
  %209 = vmatpush2.msra.mxu0 0.0
  %210 = vmatprep.subr.mxu0 0.0
  %211 = vmatpush2.msra.mxu0 0.0
  %212 = vmatprep.subr.mxu0 0.0
  %213 = vmatpush2.msra.mxu0 0.0
  %214 = vmatprep.subr.mxu0 0.0
  %215 = vmatpush2.msra.mxu0 0.0
  %216 = vmatprep.subr.mxu0 0.0
  %217 = vmatpush2.msra.mxu0 0.0
  %218 = vmatprep.subr.mxu0 0.0
  %219 = vmatpush2.msra.mxu0 0.0
  %220 = vmatprep.subr.mxu0 0.0
  %221 = vmatpush2.msra.mxu0 0.0
  %222 = vmatprep.mubr.f32.mxu0 0.0
  %223 = vmatmul.mubr.f32.gmra.mxu0 %v63
  %v224 = vpop.f32.mrf.mxu0
  %v225 = vadd.f32 %v60, %v224
  %v226 = vpop.f32.mrf.mxu0
  %227 = vmatprep.mubr.f32.mxu0 0.0
  %228 = vmatmul.mubr.f32.gmra.mxu0 %v66
  %v229 = vpop.f32.mrf.mxu0
  %v230 = vadd.f32 %v60, %v229
  %v231 = vpop.f32.mrf.mxu0
  %232 = vmatprep.mubr.f32.mxu0 0.0
  %233 = vmatmul.mubr.f32.gmra.mxu0 %v69
  %v234 = vpop.f32.mrf.mxu0
  %v235 = vadd.f32 %v60, %v234
  %v236 = vpop.f32.mrf.mxu0
  %237 = vmatprep.mubr.f32.mxu0 0.0
  %238 = vmatmul.mubr.f32.gmra.mxu0 %v72
  %v239 = vpop.f32.mrf.mxu0
  %v240 = vadd.f32 %v60, %v239
  %v241 = vpop.f32.mrf.mxu0
  %242 = vmatprep.mubr.f32.mxu0 0.0
  %243 = vmatmul.mubr.f32.gmra.mxu0 %v75
  %v244 = vpop.f32.mrf.mxu0
  %v245 = vadd.f32 %v60, %v244
  %v246 = vpop.f32.mrf.mxu0
  %247 = vmatprep.mubr.f32.mxu0 0.0
  %248 = vmatmul.mubr.f32.gmra.mxu0 %v78
  %v249 = vpop.f32.mrf.mxu0
  %v250 = vadd.f32 %v60, %v249
  %v251 = vpop.f32.mrf.mxu0
  %252 = vmatprep.mubr.f32.mxu0 0.0
  %253 = vmatmul.mubr.f32.gmra.mxu0 %v81
  %v254 = vpop.f32.mrf.mxu0
  %v255 = vadd.f32 %v60, %v254
  %v256 = vpop.f32.mrf.mxu0
  %257 = vmatprep.mubr.f32.mxu0 0.0
  %258 = vmatmul.mubr.f32.gmra.mxu0 %v84
  %v259 = vpop.f32.mrf.mxu0
  %v260 = vadd.f32 %v60, %v259
  %v261 = vpop.f32.mrf.mxu0
  %262 = vmatprep.mubr.f32.mxu0 0.0
  %263 = vmatmul.mubr.f32.gmra.mxu0 %v87
  %v264 = vpop.f32.mrf.mxu0
  %v265 = vadd.f32 %v60, %v264
  %v266 = vpop.f32.mrf.mxu0
  %267 = vmatprep.mubr.f32.mxu0 0.0
  %268 = vmatmul.mubr.f32.gmra.mxu0 %v90
  %v269 = vpop.f32.mrf.mxu0
  %v270 = vadd.f32 %v60, %v269
  %v271 = vpop.f32.mrf.mxu0
  %272 = vmatprep.mubr.f32.mxu0 0.0
  %273 = vmatmul.mubr.f32.gmra.mxu0 %v93
  %v274 = vpop.f32.mrf.mxu0
  %v275 = vadd.f32 %v60, %v274
  %v276 = vpop.f32.mrf.mxu0
  %277 = vmatprep.mubr.f32.mxu0 0.0
  %278 = vmatmul.mubr.f32.gmra.mxu0 %v96
  %v279 = vpop.f32.mrf.mxu0
  %v280 = vadd.f32 %v60, %v279
  %v281 = vpop.f32.mrf.mxu0
  %282 = vmatprep.mubr.f32.mxu0 0.0
  %283 = vmatmul.mubr.f32.gmra.mxu0 %v99
  %v284 = vpop.f32.mrf.mxu0
  %v285 = vadd.f32 %v60, %v284
  %v286 = vpop.f32.mrf.mxu0
  %287 = vmatprep.mubr.f32.mxu0 0.0
  %288 = vmatmul.mubr.f32.gmra.mxu0 %v102
  %v289 = vpop.f32.mrf.mxu0
  %v290 = vadd.f32 %v60, %v289
  %v291 = vpop.f32.mrf.mxu0
  %292 = vmatprep.mubr.f32.mxu0 0.0
  %293 = vmatmul.mubr.f32.gmra.mxu0 %v105
  %v294 = vpop.f32.mrf.mxu0
  %v295 = vadd.f32 %v60, %v294
  %v296 = vpop.f32.mrf.mxu0
  %297 = vmatprep.mubr.f32.mxu0 0.0
  %298 = vmatmul.mubr.f32.gmra.mxu0 %v108
  %v299 = vpop.f32.mrf.mxu0
  %v300 = vadd.f32 %v60, %v299
  %v301 = vpop.f32.mrf.mxu0
  %302 = vmatprep.mubr.f32.mxu0 0.0
  %303 = vmatmul.mubr.f32.gmra.mxu0 %v111
  %v304 = vpop.f32.mrf.mxu0
  %v305 = vadd.f32 %v60, %v304
  %v306 = vpop.f32.mrf.mxu0
  %307 = vmatprep.mubr.f32.mxu0 0.0
  %308 = vmatmul.mubr.f32.gmra.mxu0 %v114
  %v309 = vpop.f32.mrf.mxu0
  %v310 = vadd.f32 %v60, %v309
  %v311 = vpop.f32.mrf.mxu0
  %312 = vmatprep.mubr.f32.mxu0 0.0
  %313 = vmatmul.mubr.f32.gmra.mxu0 %v117
  %v314 = vpop.f32.mrf.mxu0
  %v315 = vadd.f32 %v60, %v314
  %v316 = vpop.f32.mrf.mxu0
  %317 = vmatprep.mubr.f32.mxu0 0.0
  %318 = vmatmul.mubr.f32.gmra.mxu0 %v120
  %v319 = vpop.f32.mrf.mxu0
  %v320 = vadd.f32 %v60, %v319
  %v321 = vpop.f32.mrf.mxu0
  %322 = vmatprep.mubr.f32.mxu0 0.0
  %323 = vmatmul.mubr.f32.gmra.mxu0 %v123
  %v324 = vpop.f32.mrf.mxu0
  %v325 = vadd.f32 %v60, %v324
  %v326 = vpop.f32.mrf.mxu0
  %327 = vmatprep.mubr.f32.mxu0 0.0
  %328 = vmatmul.mubr.f32.gmra.mxu0 %v126
  %v329 = vpop.f32.mrf.mxu0
  %v330 = vadd.f32 %v60, %v329
  %v331 = vpop.f32.mrf.mxu0
  %332 = vmatprep.mubr.f32.mxu0 0.0
  %333 = vmatmul.mubr.f32.gmra.mxu0 %v129
  %v334 = vpop.f32.mrf.mxu0
  %v335 = vadd.f32 %v60, %v334
  %v336 = vpop.f32.mrf.mxu0
  %337 = vmatprep.mubr.f32.mxu0 0.0
  %338 = vmatmul.mubr.f32.gmra.mxu0 %v132
  %v339 = vpop.f32.mrf.mxu0
  %v340 = vadd.f32 %v60, %v339
  %v341 = vpop.f32.mrf.mxu0
  %342 = vmatprep.mubr.f32.mxu0 0.0
  %343 = vmatmul.mubr.f32.gmra.mxu0 %v135
  %v344 = vpop.f32.mrf.mxu0
  %v345 = vadd.f32 %v60, %v344
  %v346 = vpop.f32.mrf.mxu0
  %347 = vmatprep.mubr.f32.mxu0 0.0
  %348 = vmatmul.mubr.f32.gmra.mxu0 %v138
  %v349 = vpop.f32.mrf.mxu0
  %v350 = vadd.f32 %v60, %v349
  %v351 = vpop.f32.mrf.mxu0
  %352 = vmatprep.mubr.f32.mxu0 0.0
  %353 = vmatmul.mubr.f32.gmra.mxu0 %v141
  %v354 = vpop.f32.mrf.mxu0
  %v355 = vadd.f32 %v60, %v354
  %v356 = vpop.f32.mrf.mxu0
  %357 = vmatprep.mubr.f32.mxu0 0.0
  %358 = vmatmul.mubr.f32.gmra.mxu0 %v144
  %v359 = vpop.f32.mrf.mxu0
  %v360 = vadd.f32 %v60, %v359
  %v361 = vpop.f32.mrf.mxu0
  %362 = vmatprep.mubr.f32.mxu0 0.0
  %363 = vmatmul.mubr.f32.gmra.mxu0 %v147
  %v364 = vpop.f32.mrf.mxu0
  %v365 = vadd.f32 %v60, %v364
  %v366 = vpop.f32.mrf.mxu0
  %367 = vmatprep.mubr.f32.mxu0 0.0
  %368 = vmatmul.mubr.f32.gmra.mxu0 %v150
  %v369 = vpop.f32.mrf.mxu0
  %v370 = vadd.f32 %v60, %v369
  %v371 = vpop.f32.mrf.mxu0
  %372 = vmatprep.mubr.f32.mxu0 0.0
  %373 = vmatmul.mubr.f32.gmra.mxu0 %v153
  %v374 = vpop.f32.mrf.mxu0
  %v375 = vadd.f32 %v60, %v374
  %v376 = vpop.f32.mrf.mxu0
  %377 = vmatprep.mubr.f32.mxu0 0.0
  %378 = vmatmul.mubr.f32.gmra.mxu0 %v156
  %v379 = vpop.f32.mrf.mxu0
  %v380 = vadd.f32 %v60, %v379
  %v381 = vpop.f32.mrf.mxu0
  %382 = vdwg.mxu0
  %v383 = vmax.f32 %v225, 0.0
  %v384 = vmax.f32 %v230, 0.0
  %v385 = vmax.f32 %v235, 0.0
  %v386 = vmax.f32 %v240, 0.0
  %v387 = vmax.f32 %v245, 0.0
  %v388 = vmax.f32 %v250, 0.0
  %v389 = vmax.f32 %v255, 0.0
  %v390 = vmax.f32 %v260, 0.0
  %v391 = vmax.f32 %v265, 0.0
  %v392 = vmax.f32 %v270, 0.0
  %v393 = vmax.f32 %v275, 0.0
  %v394 = vmax.f32 %v280, 0.0
  %v395 = vmax.f32 %v285, 0.0
  %v396 = vmax.f32 %v290, 0.0
  %v397 = vmax.f32 %v295, 0.0
  %v398 = vmax.f32 %v300, 0.0
  %v399 = vmax.f32 %v305, 0.0
  %v400 = vmax.f32 %v310, 0.0
  %v401 = vmax.f32 %v315, 0.0
  %v402 = vmax.f32 %v320, 0.0
  %v403 = vmax.f32 %v325, 0.0
  %v404 = vmax.f32 %v330, 0.0
  %v405 = vmax.f32 %v335, 0.0
  %v406 = vmax.f32 %v340, 0.0
  %v407 = vmax.f32 %v345, 0.0
  %v408 = vmax.f32 %v350, 0.0
  %v409 = vmax.f32 %v355, 0.0
  %v410 = vmax.f32 %v360, 0.0
  %v411 = vmax.f32 %v365, 0.0
  %v412 = vmax.f32 %v370, 0.0
  %v413 = vmax.f32 %v375, 0.0
  %v414 = vmax.f32 %v380, 0.0
  %v415 = vadd.f32 %v383, %v384
  %v416 = vadd.f32 %v415, %v385
  %v417 = vadd.f32 %v416, %v386
  %v418 = vadd.f32 %v417, %v387
  %v419 = vadd.f32 %v418, %v388
  %v420 = vadd.f32 %v419, %v389
  %v421 = vadd.f32 %v420, %v390
  %v422 = vadd.f32 %v421, %v391
  %v423 = vadd.f32 %v422, %v392
  %v424 = vadd.f32 %v423, %v393
  %v425 = vadd.f32 %v424, %v394
  %v426 = vadd.f32 %v425, %v395
  %v427 = vadd.f32 %v426, %v396
  %v428 = vadd.f32 %v427, %v397
  %v429 = vadd.f32 %v428, %v398
  %v430 = vadd.f32 %v429, %v399
  %v431 = vadd.f32 %v430, %v400
  %v432 = vadd.f32 %v431, %v401
  %v433 = vadd.f32 %v432, %v402
  %v434 = vadd.f32 %v433, %v403
  %v435 = vadd.f32 %v434, %v404
  %v436 = vadd.f32 %v435, %v405
  %v437 = vadd.f32 %v436, %v406
  %v438 = vadd.f32 %v437, %v407
  %v439 = vadd.f32 %v438, %v408
  %v440 = vadd.f32 %v439, %v409
  %v441 = vadd.f32 %v440, %v410
  %v442 = vadd.f32 %v441, %v411
  %v443 = vadd.f32 %v442, %v412
  %v444 = vadd.f32 %v443, %v413
  %v445 = vadd.f32 %v444, %v414
  %v446 = vrot.slane %v445, 4
  %v447 = vadd.f32 %v445, %v446
  %v448 = vrot.slane %v447, 2
  %v449 = vadd.f32 %v447, %v448
  %v450 = vrot.slane %v449, 1
  %v451 = vadd.f32 %v449, %v450
  %v452 = vmul.f32 %v451, 0.00390625
  %v453 = vsub.f32 %v383, %v452
  %v454 = vsub.f32 %v384, %v452
  %v455 = vsub.f32 %v385, %v452
  %v456 = vsub.f32 %v386, %v452
  %v457 = vsub.f32 %v387, %v452
  %v458 = vsub.f32 %v388, %v452
  %v459 = vsub.f32 %v389, %v452
  %v460 = vsub.f32 %v390, %v452
  %v461 = vsub.f32 %v391, %v452
  %v462 = vsub.f32 %v392, %v452
  %v463 = vsub.f32 %v393, %v452
  %v464 = vsub.f32 %v394, %v452
  %v465 = vsub.f32 %v395, %v452
  %v466 = vsub.f32 %v396, %v452
  %v467 = vsub.f32 %v397, %v452
  %v468 = vsub.f32 %v398, %v452
  %v469 = vsub.f32 %v399, %v452
  %v470 = vsub.f32 %v400, %v452
  %v471 = vsub.f32 %v401, %v452
  %v472 = vsub.f32 %v402, %v452
  %v473 = vsub.f32 %v403, %v452
  %v474 = vsub.f32 %v404, %v452
  %v475 = vsub.f32 %v405, %v452
  %v476 = vsub.f32 %v406, %v452
  %v477 = vsub.f32 %v407, %v452
  %v478 = vsub.f32 %v408, %v452
  %v479 = vsub.f32 %v409, %v452
  %v480 = vsub.f32 %v410, %v452
  %v481 = vsub.f32 %v411, %v452
  %v482 = vsub.f32 %v412, %v452
  %v483 = vsub.f32 %v413, %v452
  %v484 = vsub.f32 %v414, %v452
  %v485 = vmul.f32 %v453, %v453
  %v486 = vmul.f32 %v454, %v454
  %v487 = vmul.f32 %v455, %v455
  %v488 = vmul.f32 %v456, %v456
  %v489 = vmul.f32 %v457, %v457
  %v490 = vmul.f32 %v458, %v458
  %v491 = vmul.f32 %v459, %v459
  %v492 = vmul.f32 %v460, %v460
  %v493 = vmul.f32 %v461, %v461
  %v494 = vmul.f32 %v462, %v462
  %v495 = vmul.f32 %v463, %v463
  %v496 = vmul.f32 %v464, %v464
  %v497 = vmul.f32 %v465, %v465
  %v498 = vmul.f32 %v466, %v466
  %v499 = vmul.f32 %v467, %v467
  %v500 = vmul.f32 %v468, %v468
  %v501 = vmul.f32 %v469, %v469
  %v502 = vmul.f32 %v470, %v470
  %v503 = vmul.f32 %v471, %v471
  %v504 = vmul.f32 %v472, %v472
  %v505 = vmul.f32 %v473, %v473
  %v506 = vmul.f32 %v474, %v474
  %v507 = vmul.f32 %v475, %v475
  %v508 = vmul.f32 %v476, %v476
  %v509 = vmul.f32 %v477, %v477
  %v510 = vmul.f32 %v478, %v478
  %v511 = vmul.f32 %v479, %v479
  %v512 = vmul.f32 %v480, %v480
  %v513 = vmul.f32 %v481, %v481
  %v514 = vmul.f32 %v482, %v482
  %v515 = vmul.f32 %v483, %v483
  %v516 = vmul.f32 %v484, %v484
  %v517 = vadd.f32 %v485, %v486
  %v518 = vadd.f32 %v517, %v487
  %v519 = vadd.f32 %v518, %v488
  %v520 = vadd.f32 %v519, %v489
  %v521 = vadd.f32 %v520, %v490
  %v522 = vadd.f32 %v521, %v491
  %v523 = vadd.f32 %v522, %v492
  %v524 = vadd.f32 %v523, %v493
  %v525 = vadd.f32 %v524, %v494
  %v526 = vadd.f32 %v525, %v495
  %v527 = vadd.f32 %v526, %v496
  %v528 = vadd.f32 %v527, %v497
  %v529 = vadd.f32 %v528, %v498
  %v530 = vadd.f32 %v529, %v499
  %v531 = vadd.f32 %v530, %v500
  %v532 = vadd.f32 %v531, %v501
  %v533 = vadd.f32 %v532, %v502
  %v534 = vadd.f32 %v533, %v503
  %v535 = vadd.f32 %v534, %v504
  %v536 = vadd.f32 %v535, %v505
  %v537 = vadd.f32 %v536, %v506
  %v538 = vadd.f32 %v537, %v507
  %v539 = vadd.f32 %v538, %v508
  %v540 = vadd.f32 %v539, %v509
  %v541 = vadd.f32 %v540, %v510
  %v542 = vadd.f32 %v541, %v511
  %v543 = vadd.f32 %v542, %v512
  %v544 = vadd.f32 %v543, %v513
  %v545 = vadd.f32 %v544, %v514
  %v546 = vadd.f32 %v545, %v515
  %v547 = vadd.f32 %v546, %v516
  %v548 = vrot.slane %v547, 4
  %v549 = vadd.f32 %v547, %v548
  %v550 = vrot.slane %v549, 2
  %v551 = vadd.f32 %v549, %v550
  %v552 = vrot.slane %v551, 1
  %v553 = vadd.f32 %v551, %v552
  %v554 = vmul.f32 %v553, 0.00390625
  %v555 = vadd.f32 %v554, 1e-05
  %v556 = vrsqrt.pop %v555
  %v557 = vld [vmem:[%s2 + $0x1] sm:$0x1]
  %v558 = vmul.f32 %v556, %v557
  %v559 = vld [vmem:[%s2 + $0x2] sm:$0x1]
  %v560 = vmul.f32 %v452, %v558
  %v561 = vsub.f32 %v559, %v560
  %v562 = vlaneseq
  %v563 = vshrl.u32 %v562, 7
  %v564 = vsub.s32 0, %v563
  %v565 = vrot.slane %v558, %v564
  %v566 = vmul.f32 %v383, %v565
  %v567 = vmul.f32 %v384, %v565
  %v568 = vmul.f32 %v385, %v565
  %v569 = vmul.f32 %v386, %v565
  %v570 = vmul.f32 %v387, %v565
  %v571 = vmul.f32 %v388, %v565
  %v572 = vmul.f32 %v389, %v565
  %v573 = vmul.f32 %v390, %v565
  %v574 = vmul.f32 %v391, %v565
  %v575 = vmul.f32 %v392, %v565
  %v576 = vmul.f32 %v393, %v565
  %v577 = vmul.f32 %v394, %v565
  %v578 = vmul.f32 %v395, %v565
  %v579 = vmul.f32 %v396, %v565
  %v580 = vmul.f32 %v397, %v565
  %v581 = vmul.f32 %v398, %v565
  %v582 = vmul.f32 %v399, %v565
  %v583 = vmul.f32 %v400, %v565
  %v584 = vmul.f32 %v401, %v565
  %v585 = vmul.f32 %v402, %v565
  %v586 = vmul.f32 %v403, %v565
  %v587 = vmul.f32 %v404, %v565
  %v588 = vmul.f32 %v405, %v565
  %v589 = vmul.f32 %v406, %v565
  %v590 = vmul.f32 %v407, %v565
  %v591 = vmul.f32 %v408, %v565
  %v592 = vmul.f32 %v409, %v565
  %v593 = vmul.f32 %v410, %v565
  %v594 = vmul.f32 %v411, %v565
  %v595 = vmul.f32 %v412, %v565
  %v596 = vmul.f32 %v413, %v565
  %v597 = vmul.f32 %v414, %v565
  %v598 = vlaneseq
  %v599 = vshrl.u32 %v598, 7
  %v600 = vsub.s32 0, %v599
  %v601 = vrot.slane %v561, %v600
  %v602 = vadd.f32 %v566, %v601
  %v603 = vadd.f32 %v567, %v601
  %v604 = vadd.f32 %v568, %v601
  %v605 = vadd.f32 %v569, %v601
  %v606 = vadd.f32 %v570, %v601
  %v607 = vadd.f32 %v571, %v601
  %v608 = vadd.f32 %v572, %v601
  %v609 = vadd.f32 %v573, %v601
  %v610 = vadd.f32 %v574, %v601
  %v611 = vadd.f32 %v575, %v601
  %v612 = vadd.f32 %v576, %v601
  %v613 = vadd.f32 %v577, %v601
  %v614 = vadd.f32 %v578, %v601
  %v615 = vadd.f32 %v579, %v601
  %v616 = vadd.f32 %v580, %v601
  %v617 = vadd.f32 %v581, %v601
  %v618 = vadd.f32 %v582, %v601
  %v619 = vadd.f32 %v583, %v601
  %v620 = vadd.f32 %v584, %v601
  %v621 = vadd.f32 %v585, %v601
  %v622 = vadd.f32 %v586, %v601
  %v623 = vadd.f32 %v587, %v601
  %v624 = vadd.f32 %v588, %v601
  %v625 = vadd.f32 %v589, %v601
  %v626 = vadd.f32 %v590, %v601
  %v627 = vadd.f32 %v591, %v601
  %v628 = vadd.f32 %v592, %v601
  %v629 = vadd.f32 %v593, %v601
  %v630 = vadd.f32 %v594, %v601
  %v631 = vadd.f32 %v595, %v601
  %v632 = vadd.f32 %v596, %v601
  %v633 = vadd.f32 %v597, %v601
  %v634 = vld [vmem:[%s3] sm:$0xff]
  %v635 = vld [vmem:[%s3 + $0x8] sm:$0xff]
  %v636 = vld [vmem:[%s3 + $0x10] sm:$0xff]
  %v637 = vld [vmem:[%s3 + $0x18] sm:$0xff]
  %v638 = vld [vmem:[%s3 + $0x20] sm:$0xff]
  %v639 = vld [vmem:[%s3 + $0x28] sm:$0xff]
  %v640 = vld [vmem:[%s3 + $0x30] sm:$0xff]
  %v641 = vld [vmem:[%s3 + $0x38] sm:$0xff]
  %v642 = vld [vmem:[%s3 + $0x40] sm:$0xff]
  %v643 = vld [vmem:[%s3 + $0x48] sm:$0xff]
  %v644 = vld [vmem:[%s3 + $0x50] sm:$0xff]
  %v645 = vld [vmem:[%s3 + $0x58] sm:$0xff]
  %v646 = vld [vmem:[%s3 + $0x60] sm:$0xff]
  %v647 = vld [vmem:[%s3 + $0x68] sm:$0xff]
  %v648 = vld [vmem:[%s3 + $0x70] sm:$0xff]
  %v649 = vld [vmem:[%s3 + $0x78] sm:$0xff]
  %v650 = vld [vmem:[%s4] sm:$0x1]
  %v652 = vlaneseq
  %v653 = vshrl.u32 %v652, 7
  %v654 = vsub.s32 0, %v653
  %v655 = vrot.slane %v650, %v654
  %657 = vmatprep.subr.mxu0 0.0
  %658 = vmatpush1.msra.mxu0 %v649
  %659 = vmatprep.subr.mxu0 0.0
  %660 = vmatpush1.msra.mxu0 %v648
  %661 = vmatprep.subr.mxu0 0.0
  %662 = vmatpush1.msra.mxu0 %v647
  %663 = vmatprep.subr.mxu0 0.0
  %664 = vmatpush1.msra.mxu0 %v646
  %665 = vmatprep.subr.mxu0 0.0
  %666 = vmatpush1.msra.mxu0 %v645
  %667 = vmatprep.subr.mxu0 0.0
  %668 = vmatpush1.msra.mxu0 %v644
  %669 = vmatprep.subr.mxu0 0.0
  %670 = vmatpush1.msra.mxu0 %v643
  %671 = vmatprep.subr.mxu0 0.0
  %672 = vmatpush1.msra.mxu0 %v642
  %673 = vmatprep.subr.mxu0 0.0
  %674 = vmatpush1.msra.mxu0 %v641
  %675 = vmatprep.subr.mxu0 0.0
  %676 = vmatpush1.msra.mxu0 %v640
  %677 = vmatprep.subr.mxu0 0.0
  %678 = vmatpush1.msra.mxu0 %v639
  %679 = vmatprep.subr.mxu0 0.0
  %680 = vmatpush1.msra.mxu0 %v638
  %681 = vmatprep.subr.mxu0 0.0
  %682 = vmatpush1.msra.mxu0 %v637
  %683 = vmatprep.subr.mxu0 0.0
  %684 = vmatpush1.msra.mxu0 %v636
  %685 = vmatprep.subr.mxu0 0.0
  %686 = vmatpush1.msra.mxu0 %v635
  %687 = vmatprep.subr.mxu0 0.0
  %688 = vmatpush1.msra.mxu0 %v634
  %689 = vmatprep.subr.mxu0 0.0
  %690 = vmatpush2.msra.mxu0 0.0
  %691 = vmatprep.subr.mxu0 0.0
  %692 = vmatpush2.msra.mxu0 0.0
  %693 = vmatprep.subr.mxu0 0.0
  %694 = vmatpush2.msra.mxu0 0.0
  %695 = vmatprep.subr.mxu0 0.0
  %696 = vmatpush2.msra.mxu0 0.0
  %697 = vmatprep.subr.mxu0 0.0
  %698 = vmatpush2.msra.mxu0 0.0
  %699 = vmatprep.subr.mxu0 0.0
  %700 = vmatpush2.msra.mxu0 0.0
  %701 = vmatprep.subr.mxu0 0.0
  %702 = vmatpush2.msra.mxu0 0.0
  %703 = vmatprep.subr.mxu0 0.0
  %704 = vmatpush2.msra.mxu0 0.0
  %705 = vmatprep.subr.mxu0 0.0
  %706 = vmatpush2.msra.mxu0 0.0
  %707 = vmatprep.subr.mxu0 0.0
  %708 = vmatpush2.msra.mxu0 0.0
  %709 = vmatprep.subr.mxu0 0.0
  %710 = vmatpush2.msra.mxu0 0.0
  %711 = vmatprep.subr.mxu0 0.0
  %712 = vmatpush2.msra.mxu0 0.0
  %713 = vmatprep.subr.mxu0 0.0
  %714 = vmatpush2.msra.mxu0 0.0
  %715 = vmatprep.subr.mxu0 0.0
  %716 = vmatpush2.msra.mxu0 0.0
  %717 = vmatprep.subr.mxu0 0.0
  %718 = vmatpush2.msra.mxu0 0.0
  %719 = vmatprep.subr.mxu0 0.0
  %720 = vmatpush2.msra.mxu0 0.0
  %721 = vmatprep.mubr.f32.mxu0 0.0
  %722 = vmatmul.mubr.f32.gmra.mxu0 %v602
  %v723 = vpop.f32.mrf.mxu0
  %v724 = vadd.f32 %v655, %v723
  %v725 = vpop.f32.mrf.mxu0
  %726 = vmatprep.mubr.f32.mxu0 0.0
  %727 = vmatmul.mubr.f32.gmra.mxu0 %v603
  %v728 = vpop.f32.mrf.mxu0
  %v729 = vadd.f32 %v655, %v728
  %v730 = vpop.f32.mrf.mxu0
  %731 = vmatprep.mubr.f32.mxu0 0.0
  %732 = vmatmul.mubr.f32.gmra.mxu0 %v604
  %v733 = vpop.f32.mrf.mxu0
  %v734 = vadd.f32 %v655, %v733
  %v735 = vpop.f32.mrf.mxu0
  %736 = vmatprep.mubr.f32.mxu0 0.0
  %737 = vmatmul.mubr.f32.gmra.mxu0 %v605
  %v738 = vpop.f32.mrf.mxu0
  %v739 = vadd.f32 %v655, %v738
  %v740 = vpop.f32.mrf.mxu0
  %741 = vmatprep.mubr.f32.mxu0 0.0
  %742 = vmatmul.mubr.f32.gmra.mxu0 %v606
  %v743 = vpop.f32.mrf.mxu0
  %v744 = vadd.f32 %v655, %v743
  %v745 = vpop.f32.mrf.mxu0
  %746 = vmatprep.mubr.f32.mxu0 0.0
  %747 = vmatmul.mubr.f32.gmra.mxu0 %v607
  %v748 = vpop.f32.mrf.mxu0
  %v749 = vadd.f32 %v655, %v748
  %v750 = vpop.f32.mrf.mxu0
  %751 = vmatprep.mubr.f32.mxu0 0.0
  %752 = vmatmul.mubr.f32.gmra.mxu0 %v608
  %v753 = vpop.f32.mrf.mxu0
  %v754 = vadd.f32 %v655, %v753
  %v755 = vpop.f32.mrf.mxu0
  %756 = vmatprep.mubr.f32.mxu0 0.0
  %757 = vmatmul.mubr.f32.gmra.mxu0 %v609
  %v758 = vpop.f32.mrf.mxu0
  %v759 = vadd.f32 %v655, %v758
  %v760 = vpop.f32.mrf.mxu0
  %761 = vmatprep.mubr.f32.mxu0 0.0
  %762 = vmatmul.mubr.f32.gmra.mxu0 %v610
  %v763 = vpop.f32.mrf.mxu0
  %v764 = vadd.f32 %v655, %v763
  %v765 = vpop.f32.mrf.mxu0
  %766 = vmatprep.mubr.f32.mxu0 0.0
  %767 = vmatmul.mubr.f32.gmra.mxu0 %v611
  %v768 = vpop.f32.mrf.mxu0
  %v769 = vadd.f32 %v655, %v768
  %v770 = vpop.f32.mrf.mxu0
  %771 = vmatprep.mubr.f32.mxu0 0.0
  %772 = vmatmul.mubr.f32.gmra.mxu0 %v612
  %v773 = vpop.f32.mrf.mxu0
  %v774 = vadd.f32 %v655, %v773
  %v775 = vpop.f32.mrf.mxu0
  %776 = vmatprep.mubr.f32.mxu0 0.0
  %777 = vmatmul.mubr.f32.gmra.mxu0 %v613
  %v778 = vpop.f32.mrf.mxu0
  %v779 = vadd.f32 %v655, %v778
  %v780 = vpop.f32.mrf.mxu0
  %781 = vmatprep.mubr.f32.mxu0 0.0
  %782 = vmatmul.mubr.f32.gmra.mxu0 %v614
  %v783 = vpop.f32.mrf.mxu0
  %v784 = vadd.f32 %v655, %v783
  %v785 = vpop.f32.mrf.mxu0
  %786 = vmatprep.mubr.f32.mxu0 0.0
  %787 = vmatmul.mubr.f32.gmra.mxu0 %v615
  %v788 = vpop.f32.mrf.mxu0
  %v789 = vadd.f32 %v655, %v788
  %v790 = vpop.f32.mrf.mxu0
  %791 = vmatprep.mubr.f32.mxu0 0.0
  %792 = vmatmul.mubr.f32.gmra.mxu0 %v616
  %v793 = vpop.f32.mrf.mxu0
  %v794 = vadd.f32 %v655, %v793
  %v795 = vpop.f32.mrf.mxu0
  %796 = vmatprep.mubr.f32.mxu0 0.0
  %797 = vmatmul.mubr.f32.gmra.mxu0 %v617
  %v798 = vpop.f32.mrf.mxu0
  %v799 = vadd.f32 %v655, %v798
  %v800 = vpop.f32.mrf.mxu0
  %801 = vmatprep.mubr.f32.mxu0 0.0
  %802 = vmatmul.mubr.f32.gmra.mxu0 %v618
  %v803 = vpop.f32.mrf.mxu0
  %v804 = vadd.f32 %v655, %v803
  %v805 = vpop.f32.mrf.mxu0
  %806 = vmatprep.mubr.f32.mxu0 0.0
  %807 = vmatmul.mubr.f32.gmra.mxu0 %v619
  %v808 = vpop.f32.mrf.mxu0
  %v809 = vadd.f32 %v655, %v808
  %v810 = vpop.f32.mrf.mxu0
  %811 = vmatprep.mubr.f32.mxu0 0.0
  %812 = vmatmul.mubr.f32.gmra.mxu0 %v620
  %v813 = vpop.f32.mrf.mxu0
  %v814 = vadd.f32 %v655, %v813
  %v815 = vpop.f32.mrf.mxu0
  %816 = vmatprep.mubr.f32.mxu0 0.0
  %817 = vmatmul.mubr.f32.gmra.mxu0 %v621
  %v818 = vpop.f32.mrf.mxu0
  %v819 = vadd.f32 %v655, %v818
  %v820 = vpop.f32.mrf.mxu0
  %821 = vmatprep.mubr.f32.mxu0 0.0
  %822 = vmatmul.mubr.f32.gmra.mxu0 %v622
  %v823 = vpop.f32.mrf.mxu0
  %v824 = vadd.f32 %v655, %v823
  %v825 = vpop.f32.mrf.mxu0
  %826 = vmatprep.mubr.f32.mxu0 0.0
  %827 = vmatmul.mubr.f32.gmra.mxu0 %v623
  %v828 = vpop.f32.mrf.mxu0
  %v829 = vadd.f32 %v655, %v828
  %v830 = vpop.f32.mrf.mxu0
  %831 = vmatprep.mubr.f32.mxu0 0.0
  %832 = vmatmul.mubr.f32.gmra.mxu0 %v624
  %v833 = vpop.f32.mrf.mxu0
  %v834 = vadd.f32 %v655, %v833
  %v835 = vpop.f32.mrf.mxu0
  %836 = vmatprep.mubr.f32.mxu0 0.0
  %837 = vmatmul.mubr.f32.gmra.mxu0 %v625
  %v838 = vpop.f32.mrf.mxu0
  %v839 = vadd.f32 %v655, %v838
  %v840 = vpop.f32.mrf.mxu0
  %841 = vmatprep.mubr.f32.mxu0 0.0
  %842 = vmatmul.mubr.f32.gmra.mxu0 %v626
  %v843 = vpop.f32.mrf.mxu0
  %v844 = vadd.f32 %v655, %v843
  %v845 = vpop.f32.mrf.mxu0
  %846 = vmatprep.mubr.f32.mxu0 0.0
  %847 = vmatmul.mubr.f32.gmra.mxu0 %v627
  %v848 = vpop.f32.mrf.mxu0
  %v849 = vadd.f32 %v655, %v848
  %v850 = vpop.f32.mrf.mxu0
  %851 = vmatprep.mubr.f32.mxu0 0.0
  %852 = vmatmul.mubr.f32.gmra.mxu0 %v628
  %v853 = vpop.f32.mrf.mxu0
  %v854 = vadd.f32 %v655, %v853
  %v855 = vpop.f32.mrf.mxu0
  %856 = vmatprep.mubr.f32.mxu0 0.0
  %857 = vmatmul.mubr.f32.gmra.mxu0 %v629
  %v858 = vpop.f32.mrf.mxu0
  %v859 = vadd.f32 %v655, %v858
  %v860 = vpop.f32.mrf.mxu0
  %861 = vmatprep.mubr.f32.mxu0 0.0
  %862 = vmatmul.mubr.f32.gmra.mxu0 %v630
  %v863 = vpop.f32.mrf.mxu0
  %v864 = vadd.f32 %v655, %v863
  %v865 = vpop.f32.mrf.mxu0
  %866 = vmatprep.mubr.f32.mxu0 0.0
  %867 = vmatmul.mubr.f32.gmra.mxu0 %v631
  %v868 = vpop.f32.mrf.mxu0
  %v869 = vadd.f32 %v655, %v868
  %v870 = vpop.f32.mrf.mxu0
  %871 = vmatprep.mubr.f32.mxu0 0.0
  %872 = vmatmul.mubr.f32.gmra.mxu0 %v632
  %v873 = vpop.f32.mrf.mxu0
  %v874 = vadd.f32 %v655, %v873
  %v875 = vpop.f32.mrf.mxu0
  %876 = vmatprep.mubr.f32.mxu0 0.0
  %877 = vmatmul.mubr.f32.gmra.mxu0 %v633
  %v878 = vpop.f32.mrf.mxu0
  %v879 = vadd.f32 %v655, %v878
  %v880 = vpop.f32.mrf.mxu0
  %881 = vdwg.mxu0
  %v882 = vmax.f32 %v724, 0.0
  %v883 = vmax.f32 %v729, 0.0
  %v884 = vmax.f32 %v734, 0.0
  %v885 = vmax.f32 %v739, 0.0
  %v886 = vmax.f32 %v744, 0.0
  %v887 = vmax.f32 %v749, 0.0
  %v888 = vmax.f32 %v754, 0.0
  %v889 = vmax.f32 %v759, 0.0
  %v890 = vmax.f32 %v764, 0.0
  %v891 = vmax.f32 %v769, 0.0
  %v892 = vmax.f32 %v774, 0.0
  %v893 = vmax.f32 %v779, 0.0
  %v894 = vmax.f32 %v784, 0.0
  %v895 = vmax.f32 %v789, 0.0
  %v896 = vmax.f32 %v794, 0.0
  %v897 = vmax.f32 %v799, 0.0
  %v898 = vmax.f32 %v804, 0.0
  %v899 = vmax.f32 %v809, 0.0
  %v900 = vmax.f32 %v814, 0.0
  %v901 = vmax.f32 %v819, 0.0
  %v902 = vmax.f32 %v824, 0.0
  %v903 = vmax.f32 %v829, 0.0
  %v904 = vmax.f32 %v834, 0.0
  %v905 = vmax.f32 %v839, 0.0
  %v906 = vmax.f32 %v844, 0.0
  %v907 = vmax.f32 %v849, 0.0
  %v908 = vmax.f32 %v854, 0.0
  %v909 = vmax.f32 %v859, 0.0
  %v910 = vmax.f32 %v864, 0.0
  %v911 = vmax.f32 %v869, 0.0
  %v912 = vmax.f32 %v874, 0.0
  %v913 = vmax.f32 %v879, 0.0
  %vm914 = vcmask 130048
  %915 = vst.msk [vmem:[%s5] sm:$0xff] %vm914, %v882
  %916 = vst.msk [vmem:[%s5 + $0x8] sm:$0xff] %vm914, %v883
  %917 = vst.msk [vmem:[%s5 + $0x10] sm:$0xff] %vm914, %v884
  %918 = vst.msk [vmem:[%s5 + $0x18] sm:$0xff] %vm914, %v885
  %919 = vst.msk [vmem:[%s5 + $0x20] sm:$0xff] %vm914, %v886
  %920 = vst.msk [vmem:[%s5 + $0x28] sm:$0xff] %vm914, %v887
  %921 = vst.msk [vmem:[%s5 + $0x30] sm:$0xff] %vm914, %v888
  %922 = vst.msk [vmem:[%s5 + $0x38] sm:$0xff] %vm914, %v889
  %923 = vst.msk [vmem:[%s5 + $0x40] sm:$0xff] %vm914, %v890
  %924 = vst.msk [vmem:[%s5 + $0x48] sm:$0xff] %vm914, %v891
  %925 = vst.msk [vmem:[%s5 + $0x50] sm:$0xff] %vm914, %v892
  %926 = vst.msk [vmem:[%s5 + $0x58] sm:$0xff] %vm914, %v893
  %927 = vst.msk [vmem:[%s5 + $0x60] sm:$0xff] %vm914, %v894
  %928 = vst.msk [vmem:[%s5 + $0x68] sm:$0xff] %vm914, %v895
  %929 = vst.msk [vmem:[%s5 + $0x70] sm:$0xff] %vm914, %v896
  %930 = vst.msk [vmem:[%s5 + $0x78] sm:$0xff] %vm914, %v897
  %931 = vst.msk [vmem:[%s5 + $0x80] sm:$0xff] %vm914, %v898
  %932 = vst.msk [vmem:[%s5 + $0x88] sm:$0xff] %vm914, %v899
  %933 = vst.msk [vmem:[%s5 + $0x90] sm:$0xff] %vm914, %v900
  %934 = vst.msk [vmem:[%s5 + $0x98] sm:$0xff] %vm914, %v901
  %935 = vst.msk [vmem:[%s5 + $0xa0] sm:$0xff] %vm914, %v902
  %936 = vst.msk [vmem:[%s5 + $0xa8] sm:$0xff] %vm914, %v903
  %937 = vst.msk [vmem:[%s5 + $0xb0] sm:$0xff] %vm914, %v904
  %938 = vst.msk [vmem:[%s5 + $0xb8] sm:$0xff] %vm914, %v905
  %939 = vst.msk [vmem:[%s5 + $0xc0] sm:$0xff] %vm914, %v906
  %940 = vst.msk [vmem:[%s5 + $0xc8] sm:$0xff] %vm914, %v907
  %941 = vst.msk [vmem:[%s5 + $0xd0] sm:$0xff] %vm914, %v908
  %942 = vst.msk [vmem:[%s5 + $0xd8] sm:$0xff] %vm914, %v909
  %943 = vst.msk [vmem:[%s5 + $0xe0] sm:$0xff] %vm914, %v910
  %944 = vst.msk [vmem:[%s5 + $0xe8] sm:$0xff] %vm914, %v911
  %945 = vst.msk [vmem:[%s5 + $0xf0] sm:$0xff] %vm914, %v912
  %946 = vst.msk [vmem:[%s5 + $0xf8] sm:$0xff] %vm914, %v913
  // Predicated region
  $region22: #{tpu_custom_call.1} parent=0 // pred_check
    _
  $region23: #{tpu_custom_call.1} parent=0 // pred_check_branch
    %948 = sbr.rel (0) target = $region25
  $region24: #{tpu_custom_call.1} parent=0 // pred_region
    _
  $region25: #{tpu_custom_call.1} parent=0 // pred_fallthru
    _
  // Predicated region
  $region26: #{tpu_custom_call.1} parent=0 // pred_check
    _
  $region27: #{tpu_custom_call.1} parent=0 // pred_check_branch
    %950 = sbr.rel (0) target = $region29
  $region28: #{tpu_custom_call.1} parent=0 // pred_region
    _
  $region29: #{tpu_custom_call.1} parent=0 // pred_fallthru
    _

</llo_original>
